<compile_context>
chip_gen: v7x
topology: tpu7x:2x2x1
jax: 0.10.0
libtpu: 0.0.40
codegen_flags: <defaults>
</compile_context>

<pallas_src>
import functools

import jax
import jax.numpy as jnp
from jax.experimental import pallas as pl
from jax.experimental.pallas import tpu as pltpu


def _round_up(x, m):
    return ((x + m - 1) // m) * m


def _pad_to(arr, shape):
    pads = [(0, s - d) for d, s in zip(arr.shape, shape)]
    return jnp.pad(arr, pads)


def fused_rbf_kernel(*refs, num_layers, inv_two_bw, mxu_dtype):
    """Fused multi-layer RBF forward on one batch tile.

    refs layout: (x_ref, [u_t, u_sq, w_t, b] * num_layers, out_ref)
      x_ref  : [TB, Fp_0]        f32
      u_t    : [Fp_{l-1}, Np_l]  mxu_dtype (pre-transposed, zero-padded)
      u_sq   : [1, Np_l]         f32 (||u||^2 per center, padded rows = 0)
      w_t    : [Np_l, Fp_l]      mxu_dtype (pre-transposed, zero-padded)
      b      : [1, Fp_l]         f32 (zero-padded)
      out_ref: [TB, Fp_last]     f32
    """
    x_ref = refs[0]
    out_ref = refs[-1]
    params = refs[1:-1]

    h = x_ref[...].astype(jnp.float32)                       # [TB, Fp_prev]
    for l in range(num_layers):
        u_t_ref, u_sq_ref, w_t_ref, b_ref = params[4 * l: 4 * l + 4]
        # ||h||^2 per row (small lane reduction).
        h2 = jnp.sum(h * h, axis=1, keepdims=True)           # [TB, 1]
        # Cross term on the MXU (bf16 operands, f32 accumulation).
        cross = jnp.dot(h.astype(mxu_dtype), u_t_ref[...],
                        preferred_element_type=jnp.float32)  # [TB, Np]
        # Gram-expanded squared distance; clamp cancellation noise.
        dist = jnp.maximum(h2 + u_sq_ref[...] - 2.0 * cross, 0.0)
        z = jnp.exp(-inv_two_bw * dist)                      # [TB, Np] f32 (EUP)
        # Linear layer: z @ W^T + b, W^T pre-transposed -> lane-dense output.
        h = jnp.dot(z.astype(mxu_dtype), w_t_ref[...],
                    preferred_element_type=jnp.float32) + b_ref[...]
    out_ref[...] = h.astype(out_ref.dtype)


def stacked_rbf_forward(x, u_weights, w_weights, b_weights, bandwidth=1.0,
                        matmul_dtype=jnp.bfloat16, batch_tile=256):
    """Mirrors StackedRBFNet.forward (use_bias=True)."""
    num_layers = len(u_weights)
    B, n_in = x.shape
    feat = [n_in] + [int(w.shape[0]) for w in w_weights]       # M_0 .. M_L
    nunits = [int(u.shape[0]) for u in u_weights]               # N_1 .. N_L

    # Lane-/MXU-friendly padded sizes.
    feat_p = [_round_up(f, 128) for f in feat]
    nunits_p = [_round_up(n, 128) for n in nunits]

    # Batch tile: multiple of 8 sublanes, capped by batch_tile.
    TB = _round_up(min(int(batch_tile), _round_up(B, 8)), 8)
    Bp = _round_up(B, TB)

    x_pad = _pad_to(x.astype(jnp.float32), (Bp, feat_p[0]))

    flat_params = []
    in_specs = [pl.BlockSpec((TB, feat_p[0]), lambda i: (i, 0))]
    for l in range(num_layers):
        u = u_weights[l].astype(jnp.float32)                    # [N, M_prev]
        w = w_weights[l].astype(jnp.float32)                    # [M, N]
        b = b_weights[l]
        Np, Fp_prev, Fp = nunits_p[l], feat_p[l], feat_p[l + 1]

        u_sq = jnp.sum(u * u, axis=1)[None, :]                  # [1, N] f32
        u_t = _pad_to(u.T, (Fp_prev, Np)).astype(matmul_dtype)  # [Fp_prev, Np]
        u_sq_p = _pad_to(u_sq, (1, Np))                         # [1, Np]
        w_t = _pad_to(w.T, (Np, Fp)).astype(matmul_dtype)       # [Np, Fp]
        if b is None:
            b_p = jnp.zeros((1, Fp), jnp.float32)
        else:
            b_p = _pad_to(b.astype(jnp.float32)[None, :], (1, Fp))

        flat_params += [u_t, u_sq_p, w_t, b_p]
        # Constant index_maps -> weights stay resident in VMEM across the grid.
        in_specs += [
            pl.BlockSpec((Fp_prev, Np), lambda i: (0, 0)),
            pl.BlockSpec((1, Np), lambda i: (0, 0)),
            pl.BlockSpec((Np, Fp), lambda i: (0, 0)),
            pl.BlockSpec((1, Fp), lambda i: (0, 0)),
        ]

    kernel = functools.partial(
        fused_rbf_kernel,
        num_layers=num_layers,
        inv_two_bw=float(1.0 / (2.0 * bandwidth)),
        mxu_dtype=matmul_dtype,
    )

    out = pl.pallas_call(
        kernel,
        out_shape=jax.ShapeDtypeStruct((Bp, feat_p[-1]), jnp.float32),
        grid=(Bp // TB,),
        in_specs=in_specs,
        out_specs=pl.BlockSpec((TB, feat_p[-1]), lambda i: (i, 0)),
        compiler_params=pltpu.CompilerParams(
            dimension_semantics=("parallel",)),
    )(x_pad, *flat_params)

    return out[:B, :feat[-1]]


def init_params(key, n_in, n_nonlin_units, n_lin_units):
    """Deterministic parameter init mirroring StackedRBFNet.__init__ shapes.

    u_l : [N_l, M_{l-1}]  (embeddings, normal(0, 1) as in the module)
    w_l : [M_l, N_l]      (fc weight)
    b_l : [M_l]           (fc bias)
    """
    n_linear = [n_in] + list(n_lin_units)
    u_weights, w_weights, b_weights = [], [], []
    for l in range(1, len(n_linear)):
        N_l = n_nonlin_units[l - 1]
        M_prev = n_linear[l - 1]
        M_l = n_linear[l]
        key, ku, kw, kb = jax.random.split(key, 4)
        u_weights.append(jax.random.normal(ku, (N_l, M_prev), jnp.float32))
        w_weights.append(0.1 * jax.random.normal(kw, (M_l, N_l), jnp.float32))
        b_weights.append(0.1 * jax.random.normal(kb, (M_l,), jnp.float32))
    return u_weights, w_weights, b_weights


if __name__ == "__main__":
    # Small config: 2-layer RBF net.
    n_in = 4
    n_nonlin_units = (32, 16)
    n_lin_units = (16, 8)
    bandwidth = 1.0
    batch = 8

    key = jax.random.PRNGKey(0)
    key, kx = jax.random.split(key)
    x = jax.random.normal(kx, (batch, n_in), jnp.float32)

    u_weights, w_weights, b_weights = init_params(
        key, n_in, n_nonlin_units, n_lin_units)

    y = stacked_rbf_forward(x, u_weights, w_weights, b_weights, bandwidth)
    jax.block_until_ready(y)

    # Reference check in plain f32 JAX (same math as the PyTorch forward).
    h_ref = x
    for u, w, b in zip(u_weights, w_weights, b_weights):
        d = jnp.sum((h_ref[:, None, :] - u[None, :, :]) ** 2, axis=2)
        z = jnp.exp(-1.0 / (2.0 * bandwidth) * d)
        h_ref = z @ w.T + b

    assert y.shape == (batch, n_lin_units[-1])
    # bf16 MXU operands (f32 accumulation) -> relaxed tolerance vs f32 ref.
    max_err = float(jnp.max(jnp.abs(y - h_ref)))
    assert jnp.allclose(y, h_ref, atol=2e-2, rtol=2e-2), max_err

    print("KERNEL_OK")
</pallas_src>

<mosaic_0001>
module attributes {stable_mosaic.version = 11 : i64} {
  func.func @fused_rbf_kernel(%arg0: i32, %arg1: memref<8x128xf32, #tpu.memory_space<vmem>>, %arg2: memref<128x128xbf16, #tpu.memory_space<vmem>>, %arg3: memref<1x128xf32, #tpu.memory_space<vmem>>, %arg4: memref<128x128xbf16, #tpu.memory_space<vmem>>, %arg5: memref<1x128xf32, #tpu.memory_space<vmem>>, %arg6: memref<128x128xbf16, #tpu.memory_space<vmem>>, %arg7: memref<1x128xf32, #tpu.memory_space<vmem>>, %arg8: memref<128x128xbf16, #tpu.memory_space<vmem>>, %arg9: memref<1x128xf32, #tpu.memory_space<vmem>>, %arg10: memref<8x128xf32, #tpu.memory_space<vmem>>) attributes {dimension_semantics = [#tpu.dimension_semantics<parallel>], iteration_bounds = array<i64: 1>, scalar_prefetch = 0 : i64, scratch_operands = 0 : i64, tpu.core_type = #tpu.core_type<tc>, window_params = [{transform_indices = @transform_0, window_bounds = array<i64: 8, 128>}, {pipeline_mode = #tpu.pipeline_mode<synchronous>, transform_indices = @transform_1, window_bounds = array<i64: 128, 128>}, {pipeline_mode = #tpu.pipeline_mode<synchronous>, transform_indices = @transform_2, window_bounds = array<i64: 1, 128>}, {pipeline_mode = #tpu.pipeline_mode<synchronous>, transform_indices = @transform_3, window_bounds = array<i64: 128, 128>}, {pipeline_mode = #tpu.pipeline_mode<synchronous>, transform_indices = @transform_4, window_bounds = array<i64: 1, 128>}, {pipeline_mode = #tpu.pipeline_mode<synchronous>, transform_indices = @transform_5, window_bounds = array<i64: 128, 128>}, {pipeline_mode = #tpu.pipeline_mode<synchronous>, transform_indices = @transform_6, window_bounds = array<i64: 1, 128>}, {pipeline_mode = #tpu.pipeline_mode<synchronous>, transform_indices = @transform_7, window_bounds = array<i64: 128, 128>}, {pipeline_mode = #tpu.pipeline_mode<synchronous>, transform_indices = @transform_8, window_bounds = array<i64: 1, 128>}, {transform_indices = @transform_9, window_bounds = array<i64: 8, 128>}]} {
    %c0 = arith.constant 0 : index
    %c0_0 = arith.constant 0 : index
    %0 = vector.load %arg1[%c0, %c0_0] : memref<8x128xf32, #tpu.memory_space<vmem>>, vector<8x128xf32>
    %1 = arith.mulf %0, %0 : vector<8x128xf32>
    %cst = arith.constant dense<0.000000e+00> : vector<8xf32>
    %2 = vector.multi_reduction <add>, %1, %cst [1] : vector<8x128xf32> to vector<8xf32>
    %3 = vector.shape_cast %2 : vector<8xf32> to vector<8x1xf32>
    %4 = arith.truncf %0 : vector<8x128xf32> to vector<8x128xbf16>
    %c0_1 = arith.constant 0 : index
    %c0_2 = arith.constant 0 : index
    %5 = vector.load %arg2[%c0_1, %c0_2] : memref<128x128xbf16, #tpu.memory_space<vmem>>, vector<128x128xbf16>
    %cst_3 = arith.constant dense<0.000000e+00> : vector<8x128xf32>
    %6 = tpu.matmul %4, %5, %cst_3 {dimension_numbers = #tpu.dot_dimension_numbers<[1], [0], [0], [1], [0, 0, 1, 1], [], []>} : vector<8x128xbf16>, vector<128x128xbf16>, vector<8x128xf32> -> vector<8x128xf32>
    %c0_4 = arith.constant 0 : index
    %c0_5 = arith.constant 0 : index
    %7 = vector.load %arg3[%c0_4, %c0_5] : memref<1x128xf32, #tpu.memory_space<vmem>>, vector<1x128xf32>
    %8 = vector.broadcast %3 : vector<8x1xf32> to vector<8x128xf32>
    %9 = vector.broadcast %7 : vector<1x128xf32> to vector<8x128xf32>
    %10 = arith.addf %8, %9 : vector<8x128xf32>
    %cst_6 = arith.constant 2.000000e+00 : f32
    %11 = vector.broadcast %cst_6 : f32 to vector<8x128xf32>
    %12 = arith.mulf %11, %6 : vector<8x128xf32>
    %13 = arith.subf %10, %12 : vector<8x128xf32>
    %cst_7 = arith.constant 0.000000e+00 : f32
    %14 = vector.broadcast %cst_7 : f32 to vector<8x128xf32>
    %15 = arith.maximumf %13, %14 : vector<8x128xf32>
    %cst_8 = arith.constant -5.000000e-01 : f32
    %16 = vector.broadcast %cst_8 : f32 to vector<8x128xf32>
    %17 = arith.mulf %16, %15 : vector<8x128xf32>
    %18 = math.exp %17 : vector<8x128xf32>
    %19 = arith.truncf %18 : vector<8x128xf32> to vector<8x128xbf16>
    %c0_9 = arith.constant 0 : index
    %c0_10 = arith.constant 0 : index
    %20 = vector.load %arg4[%c0_9, %c0_10] : memref<128x128xbf16, #tpu.memory_space<vmem>>, vector<128x128xbf16>
    %cst_11 = arith.constant dense<0.000000e+00> : vector<8x128xf32>
    %21 = tpu.matmul %19, %20, %cst_11 {dimension_numbers = #tpu.dot_dimension_numbers<[1], [0], [0], [1], [0, 0, 1, 1], [], []>} : vector<8x128xbf16>, vector<128x128xbf16>, vector<8x128xf32> -> vector<8x128xf32>
    %c0_12 = arith.constant 0 : index
    %c0_13 = arith.constant 0 : index
    %22 = vector.load %arg5[%c0_12, %c0_13] : memref<1x128xf32, #tpu.memory_space<vmem>>, vector<1x128xf32>
    %23 = vector.broadcast %22 : vector<1x128xf32> to vector<8x128xf32>
    %24 = arith.addf %21, %23 : vector<8x128xf32>
    %25 = arith.mulf %24, %24 : vector<8x128xf32>
    %cst_14 = arith.constant dense<0.000000e+00> : vector<8xf32>
    %26 = vector.multi_reduction <add>, %25, %cst_14 [1] : vector<8x128xf32> to vector<8xf32>
    %27 = vector.shape_cast %26 : vector<8xf32> to vector<8x1xf32>
    %28 = arith.truncf %24 : vector<8x128xf32> to vector<8x128xbf16>
    %c0_15 = arith.constant 0 : index
    %c0_16 = arith.constant 0 : index
    %29 = vector.load %arg6[%c0_15, %c0_16] : memref<128x128xbf16, #tpu.memory_space<vmem>>, vector<128x128xbf16>
    %cst_17 = arith.constant dense<0.000000e+00> : vector<8x128xf32>
    %30 = tpu.matmul %28, %29, %cst_17 {dimension_numbers = #tpu.dot_dimension_numbers<[1], [0], [0], [1], [0, 0, 1, 1], [], []>} : vector<8x128xbf16>, vector<128x128xbf16>, vector<8x128xf32> -> vector<8x128xf32>
    %c0_18 = arith.constant 0 : index
    %c0_19 = arith.constant 0 : index
    %31 = vector.load %arg7[%c0_18, %c0_19] : memref<1x128xf32, #tpu.memory_space<vmem>>, vector<1x128xf32>
    %32 = vector.broadcast %27 : vector<8x1xf32> to vector<8x128xf32>
    %33 = vector.broadcast %31 : vector<1x128xf32> to vector<8x128xf32>
    %34 = arith.addf %32, %33 : vector<8x128xf32>
    %cst_20 = arith.constant 2.000000e+00 : f32
    %35 = vector.broadcast %cst_20 : f32 to vector<8x128xf32>
    %36 = arith.mulf %35, %30 : vector<8x128xf32>
    %37 = arith.subf %34, %36 : vector<8x128xf32>
    %cst_21 = arith.constant 0.000000e+00 : f32
    %38 = vector.broadcast %cst_21 : f32 to vector<8x128xf32>
    %39 = arith.maximumf %37, %38 : vector<8x128xf32>
    %cst_22 = arith.constant -5.000000e-01 : f32
    %40 = vector.broadcast %cst_22 : f32 to vector<8x128xf32>
    %41 = arith.mulf %40, %39 : vector<8x128xf32>
    %42 = math.exp %41 : vector<8x128xf32>
    %43 = arith.truncf %42 : vector<8x128xf32> to vector<8x128xbf16>
    %c0_23 = arith.constant 0 : index
    %c0_24 = arith.constant 0 : index
    %44 = vector.load %arg8[%c0_23, %c0_24] : memref<128x128xbf16, #tpu.memory_space<vmem>>, vector<128x128xbf16>
    %cst_25 = arith.constant dense<0.000000e+00> : vector<8x128xf32>
    %45 = tpu.matmul %43, %44, %cst_25 {dimension_numbers = #tpu.dot_dimension_numbers<[1], [0], [0], [1], [0, 0, 1, 1], [], []>} : vector<8x128xbf16>, vector<128x128xbf16>, vector<8x128xf32> -> vector<8x128xf32>
    %c0_26 = arith.constant 0 : index
    %c0_27 = arith.constant 0 : index
    %46 = vector.load %arg9[%c0_26, %c0_27] : memref<1x128xf32, #tpu.memory_space<vmem>>, vector<1x128xf32>
    %47 = vector.broadcast %46 : vector<1x128xf32> to vector<8x128xf32>
    %48 = arith.addf %45, %47 : vector<8x128xf32>
    %c0_28 = arith.constant 0 : index
    %c0_29 = arith.constant 0 : index
    %49 = vector.load %arg10[%c0_28, %c0_29] : memref<8x128xf32, #tpu.memory_space<vmem>>, vector<8x128xf32>
    tpu.vector_store %arg10[%c0_28, %c0_29], %48 {strides = array<i32>} : memref<8x128xf32, #tpu.memory_space<vmem>>, vector<8x128xf32>,
    return
  }
  func.func @transform_0(%arg0: i32) -> (i32, i32) {
    %c0_i32 = arith.constant 0 : i32
    %c0_i32_0 = arith.constant 0 : i32
    return %arg0, %c0_i32 : i32, i32
  }
  func.func @transform_1(%arg0: i32) -> (i32, i32) {
    %c0_i32 = arith.constant 0 : i32
    %c0_i32_0 = arith.constant 0 : i32
    %c0_i32_1 = arith.constant 0 : i32
    return %c0_i32, %c0_i32_0 : i32, i32
  }
  func.func @transform_2(%arg0: i32) -> (i32, i32) {
    %c0_i32 = arith.constant 0 : i32
    %c0_i32_0 = arith.constant 0 : i32
    %c0_i32_1 = arith.constant 0 : i32
    return %c0_i32, %c0_i32_0 : i32, i32
  }
  func.func @transform_3(%arg0: i32) -> (i32, i32) {
    %c0_i32 = arith.constant 0 : i32
    %c0_i32_0 = arith.constant 0 : i32
    %c0_i32_1 = arith.constant 0 : i32
    return %c0_i32, %c0_i32_0 : i32, i32
  }
  func.func @transform_4(%arg0: i32) -> (i32, i32) {
    %c0_i32 = arith.constant 0 : i32
    %c0_i32_0 = arith.constant 0 : i32
    %c0_i32_1 = arith.constant 0 : i32
    return %c0_i32, %c0_i32_0 : i32, i32
  }
  func.func @transform_5(%arg0: i32) -> (i32, i32) {
    %c0_i32 = arith.constant 0 : i32
    %c0_i32_0 = arith.constant 0 : i32
    %c0_i32_1 = arith.constant 0 : i32
    return %c0_i32, %c0_i32_0 : i32, i32
  }
  func.func @transform_6(%arg0: i32) -> (i32, i32) {
    %c0_i32 = arith.constant 0 : i32
    %c0_i32_0 = arith.constant 0 : i32
    %c0_i32_1 = arith.constant 0 : i32
    return %c0_i32, %c0_i32_0 : i32, i32
  }
  func.func @transform_7(%arg0: i32) -> (i32, i32) {
    %c0_i32 = arith.constant 0 : i32
    %c0_i32_0 = arith.constant 0 : i32
    %c0_i32_1 = arith.constant 0 : i32
    return %c0_i32, %c0_i32_0 : i32, i32
  }
  func.func @transform_8(%arg0: i32) -> (i32, i32) {
    %c0_i32 = arith.constant 0 : i32
    %c0_i32_0 = arith.constant 0 : i32
    %c0_i32_1 = arith.constant 0 : i32
    return %c0_i32, %c0_i32_0 : i32, i32
  }
  func.func @transform_9(%arg0: i32) -> (i32, i32) {
    %c0_i32 = arith.constant 0 : i32
    %c0_i32_0 = arith.constant 0 : i32
    return %arg0, %c0_i32 : i32, i32
  }
}

</mosaic_0001>

<llo_original>
// kernel: tpu_custom_call.1
$region0: #{tpu_custom_call.1}
  #allocation0 [shape = 'u32[]', space=smem, size = 0x4, offset = 0x4, fixed_abs, tag = 'smem constant byte address 0x4 - core index']
  #allocation1 [shape = 'u32[144,128]{1,0:T(1,128)}', space=vmem, size = 0x12000, scoped, tag = 'internal scratch']
  %s0 = inlined_call_operand.hbm [shape: f32[8,128], index: 0, kind: input, shape index: {}]
  %s1 = inlined_call_operand.hbm [shape: bf16[128,128], index: 1, kind: input, shape index: {}]
  %s2 = inlined_call_operand.vmem [shape: f32[1,128], index: 2, kind: input, shape index: {}]
  %s3 = inlined_call_operand.hbm [shape: bf16[128,128], index: 3, kind: input, shape index: {}]
  %s4 = inlined_call_operand.vmem [shape: f32[1,128], index: 4, kind: input, shape index: {}]
  %s5 = inlined_call_operand.hbm [shape: bf16[128,128], index: 5, kind: input, shape index: {}]
  %s6 = inlined_call_operand.vmem [shape: f32[1,128], index: 6, kind: input, shape index: {}]
  %s7 = inlined_call_operand.hbm [shape: bf16[128,128], index: 7, kind: input, shape index: {}]
  %s8 = inlined_call_operand.vmem [shape: f32[1,128], index: 8, kind: input, shape index: {}]
  %s9 = inlined_call_operand.hbm [shape: f32[8,128], index: 9, kind: output, shape index: {}]
  %s10 = sld [smem:[#allocation0]]
  $region66: #{tpu_custom_call.1} parent=0
    _
  %s12 = ssub.s32 1, %s10
  %s13 = scalar_select 0, %s12, %s10
  $region1: #{tpu_custom_call.1} parent=0
    #allocation2 [shape = 'u8[4096]{0}', space=vmem, size = 0x1000, scoped, tag = 'input window, operand 0, single buffered']
    #allocation3 [shape = 's32[1]{0}', space=sflag, size = 0x4, scoped, tag = 'scoped memory for tpu_custom_call.1']
    #allocation4 [shape = 's32[1]{0}', space=sflag, size = 0x4, scoped, tag = 'scoped memory for tpu_custom_call.1']
    #allocation5 [shape = 'u8[32768]{0}', space=vmem, size = 0x8000, scoped, tag = 'input window, operand 1, single buffered']
    #allocation6 [shape = 's32[1]{0}', space=sflag, size = 0x4, scoped, tag = 'scoped memory for tpu_custom_call.1']
    #allocation7 [shape = 'u8[32768]{0}', space=vmem, size = 0x8000, scoped, tag = 'input window, operand 3, single buffered']
    #allocation8 [shape = 'u8[32768]{0}', space=vmem, size = 0x8000, scoped, tag = 'input window, operand 5, single buffered']
    #allocation9 [shape = 's32[1]{0}', space=sflag, size = 0x4, scoped, tag = 'scoped memory for tpu_custom_call.1']
    #allocation10 [shape = 'u8[32768]{0}', space=vmem, size = 0x8000, scoped, tag = 'input window, operand 7, single buffered']
    #allocation11 [shape = 'u8[4096]{0}', space=vmem, size = 0x1000, scoped, tag = 'output window, operand 0, single buffered']
    %14 = vsyncpa [#allocation3], 0
    %15 = vsyncpa [#allocation6], 0
    %16 = vsyncpa [#allocation9], 0
    %17 = vsyncpa [#allocation4], 0
    // Predicated region
    $region2: #{tpu_custom_call.1} parent=1 // pred_check
      _
    $region3: #{tpu_custom_call.1} parent=1 // pred_check_branch
      %19 = sbr.rel (0) target = $region5
    $region4: #{tpu_custom_call.1} parent=1 // pred_region
      %s21 = ssub.s32 128, 128
      %22 = vsyncadd [#allocation3], %s21
      %s24 = sshll.u32 [#allocation2], 4
      %s25 = int_to_ptr.vmem [resolvable:$true] %s24
      %27 = dma.hbm_to_vmem [thread:$0]  %s0, 128, %s25, [#allocation3]
    $region5: #{tpu_custom_call.1} parent=1 // pred_fallthru
      _
    // Predicated region
    $region6: #{tpu_custom_call.1} parent=1 // pred_check
      _
    $region7: #{tpu_custom_call.1} parent=1 // pred_check_branch
      %29 = sbr.rel (0) target = $region9
    $region8: #{tpu_custom_call.1} parent=1 // pred_region
      %s31 = ssub.s32 1024, 1024
      %32 = vsyncadd [#allocation6], %s31
      %s33 = sshll.u32 [#allocation5], 4
      %s34 = int_to_ptr.vmem [resolvable:$true] %s33
      %39 = dma.hbm_to_vmem [thread:$0]  %s1, 1024, %s34, [#allocation6], 64, 64, 4
    $region9: #{tpu_custom_call.1} parent=1 // pred_fallthru
      _
    // Predicated region
    $region10: #{tpu_custom_call.1} parent=1 // pred_check
      _
    $region11: #{tpu_custom_call.1} parent=1 // pred_check_branch
      %41 = sbr.rel (0) target = $region13
    $region12: #{tpu_custom_call.1} parent=1 // pred_region
      _
    $region13: #{tpu_custom_call.1} parent=1 // pred_fallthru
      _
    // Predicated region
    $region14: #{tpu_custom_call.1} parent=1 // pred_check
      _
    $region15: #{tpu_custom_call.1} parent=1 // pred_check_branch
      %43 = sbr.rel (0) target = $region17
    $region16: #{tpu_custom_call.1} parent=1 // pred_region
      %s45 = ssub.s32 1024, 1024
      %46 = vsyncadd [#allocation6], %s45
      %s47 = sshll.u32 [#allocation7], 4
      %s48 = int_to_ptr.vmem [resolvable:$true] %s47
      %53 = dma.hbm_to_vmem [thread:$0]  %s3, 1024, %s48, [#allocation6], 64, 64, 4
    $region17: #{tpu_custom_call.1} parent=1 // pred_fallthru
      _
    // Predicated region
    $region18: #{tpu_custom_call.1} parent=1 // pred_check
      _
    $region19: #{tpu_custom_call.1} parent=1 // pred_check_branch
      %55 = sbr.rel (0) target = $region21
    $region20: #{tpu_custom_call.1} parent=1 // pred_region
      _
    $region21: #{tpu_custom_call.1} parent=1 // pred_fallthru
      _
    // Predicated region
    $region22: #{tpu_custom_call.1} parent=1 // pred_check
      _
    $region23: #{tpu_custom_call.1} parent=1 // pred_check_branch
      %57 = sbr.rel (0) target = $region25
    $region24: #{tpu_custom_call.1} parent=1 // pred_region
      %s59 = ssub.s32 1024, 1024
      %60 = vsyncadd [#allocation9], %s59
      %s61 = sshll.u32 [#allocation8], 4
      %s62 = int_to_ptr.vmem [resolvable:$true] %s61
      %67 = dma.hbm_to_vmem [thread:$0]  %s5, 1024, %s62, [#allocation9], 64, 64, 4
    $region25: #{tpu_custom_call.1} parent=1 // pred_fallthru
      _
    // Predicated region
    $region26: #{tpu_custom_call.1} parent=1 // pred_check
      _
    $region27: #{tpu_custom_call.1} parent=1 // pred_check_branch
      %69 = sbr.rel (0) target = $region29
    $region28: #{tpu_custom_call.1} parent=1 // pred_region
      _
    $region29: #{tpu_custom_call.1} parent=1 // pred_fallthru
      _
    // Predicated region
    $region30: #{tpu_custom_call.1} parent=1 // pred_check
      _
    $region31: #{tpu_custom_call.1} parent=1 // pred_check_branch
      %71 = sbr.rel (0) target = $region33
    $region32: #{tpu_custom_call.1} parent=1 // pred_region
      %s73 = ssub.s32 1024, 1024
      %74 = vsyncadd [#allocation9], %s73
      %s75 = sshll.u32 [#allocation10], 4
      %s76 = int_to_ptr.vmem [resolvable:$true] %s75
      %81 = dma.hbm_to_vmem [thread:$0]  %s7, 1024, %s76, [#allocation9], 64, 64, 4
    $region33: #{tpu_custom_call.1} parent=1 // pred_fallthru
      _
    // Predicated region
    $region34: #{tpu_custom_call.1} parent=1 // pred_check
      _
    $region35: #{tpu_custom_call.1} parent=1 // pred_check_branch
      %83 = sbr.rel (0) target = $region37
    $region36: #{tpu_custom_call.1} parent=1 // pred_region
      _
    $region37: #{tpu_custom_call.1} parent=1 // pred_fallthru
      _
    // Predicated region
    $region38: #{tpu_custom_call.1} parent=1 // pred_check
      _
    $region39: #{tpu_custom_call.1} parent=1 // pred_check_branch
      %85 = sbr.rel (0) target = $region41
    $region40: #{tpu_custom_call.1} parent=1 // pred_region
      %86 = dma.done [#allocation3], 128
    $region41: #{tpu_custom_call.1} parent=1 // pred_fallthru
      _
    // Predicated region
    $region42: #{tpu_custom_call.1} parent=1 // pred_check
      _
    $region43: #{tpu_custom_call.1} parent=1 // pred_check_branch
      %88 = sbr.rel (0) target = $region45
    $region44: #{tpu_custom_call.1} parent=1 // pred_region
      %89 = dma.done [#allocation6], 1024
    $region45: #{tpu_custom_call.1} parent=1 // pred_fallthru
      _
    // Predicated region
    $region46: #{tpu_custom_call.1} parent=1 // pred_check
      _
    $region47: #{tpu_custom_call.1} parent=1 // pred_check_branch
      %91 = sbr.rel (0) target = $region49
    $region48: #{tpu_custom_call.1} parent=1 // pred_region
      %92 = dma.done [#allocation6], 1024
    $region49: #{tpu_custom_call.1} parent=1 // pred_fallthru
      _
    // Predicated region
    $region50: #{tpu_custom_call.1} parent=1 // pred_check
      _
    $region51: #{tpu_custom_call.1} parent=1 // pred_check_branch
      %94 = sbr.rel (0) target = $region53
    $region52: #{tpu_custom_call.1} parent=1 // pred_region
      %95 = dma.done [#allocation9], 1024
    $region53: #{tpu_custom_call.1} parent=1 // pred_fallthru
      _
    // Predicated region
    $region54: #{tpu_custom_call.1} parent=1 // pred_check
      _
    $region55: #{tpu_custom_call.1} parent=1 // pred_check_branch
      %97 = sbr.rel (0) target = $region57
    $region56: #{tpu_custom_call.1} parent=1 // pred_region
      %98 = dma.done [#allocation9], 1024
    $region57: #{tpu_custom_call.1} parent=1 // pred_fallthru
      _
    %v100 = vld [vmem:[#allocation2] sm:$0xff]
    %v101 = vmul.f32 %v100, %v100
    %102 = vadd.xlane.f32.xlu0 %v101
    %v103 = vpop.xlane.xlu0 %102
    %v104 = vpack.c.bf16 %v100, %v100
    %v105 = vld [vmem:[#allocation5] sm:$0xf]
    %v106 = vld [vmem:[#allocation5 + $0x4] sm:$0xf]
    %v107 = vld [vmem:[#allocation5 + $0x8] sm:$0xf]
    %v108 = vld [vmem:[#allocation5 + $0xc] sm:$0xf]
    %v109 = vld [vmem:[#allocation5 + $0x10] sm:$0xf]
    %v110 = vld [vmem:[#allocation5 + $0x14] sm:$0xf]
    %v111 = vld [vmem:[#allocation5 + $0x18] sm:$0xf]
    %v112 = vld [vmem:[#allocation5 + $0x1c] sm:$0xf]
    %v113 = vld [vmem:[#allocation5 + $0x20] sm:$0xf]
    %v114 = vld [vmem:[#allocation5 + $0x24] sm:$0xf]
    %v115 = vld [vmem:[#allocation5 + $0x28] sm:$0xf]
    %v116 = vld [vmem:[#allocation5 + $0x2c] sm:$0xf]
    %v117 = vld [vmem:[#allocation5 + $0x30] sm:$0xf]
    %v118 = vld [vmem:[#allocation5 + $0x34] sm:$0xf]
    %v119 = vld [vmem:[#allocation5 + $0x38] sm:$0xf]
    %v120 = vld [vmem:[#allocation5 + $0x3c] sm:$0xf]
    %v137 = vunpack.c.l.b16 %v105
    %v138 = vunpack.c.l.b16 %v106
    %v139 = vunpack.c.l.b16 %v107
    %v140 = vunpack.c.l.b16 %v108
    %v141 = vunpack.c.l.b16 %v109
    %v142 = vunpack.c.l.b16 %v110
    %v143 = vunpack.c.l.b16 %v111
    %v144 = vunpack.c.l.b16 %v112
    %v145 = vunpack.c.l.b16 %v113
    %v146 = vunpack.c.l.b16 %v114
    %v147 = vunpack.c.l.b16 %v115
    %v148 = vunpack.c.l.b16 %v116
    %v149 = vunpack.c.l.b16 %v117
    %v150 = vunpack.c.l.b16 %v118
    %v151 = vunpack.c.l.b16 %v119
    %v152 = vunpack.c.l.b16 %v120
    %v153 = vpack.c.b16 %v138, %v137
    %v154 = vpack.c.b16 %v140, %v139
    %v155 = vpack.c.b16 %v142, %v141
    %v156 = vpack.c.b16 %v144, %v143
    %v157 = vpack.c.b16 %v146, %v145
    %v158 = vpack.c.b16 %v148, %v147
    %v159 = vpack.c.b16 %v150, %v149
    %v160 = vpack.c.b16 %v152, %v151
    %169 = vmatprep.subr.bf16.mxu0 0
    %170 = vmatpush1.bf16.msra.mxu0 %v153
    %171 = vmatprep.subr.bf16.mxu0 0
    %172 = vmatpush1.bf16.msra.mxu0 %v154
    %173 = vmatprep.subr.bf16.mxu0 0
    %174 = vmatpush1.bf16.msra.mxu0 %v155
    %175 = vmatprep.subr.bf16.mxu0 0
    %176 = vmatpush1.bf16.msra.mxu0 %v156
    %177 = vmatprep.subr.bf16.mxu0 0
    %178 = vmatpush1.bf16.msra.mxu0 %v157
    %179 = vmatprep.subr.bf16.mxu0 0
    %180 = vmatpush1.bf16.msra.mxu0 %v158
    %181 = vmatprep.subr.bf16.mxu0 0
    %182 = vmatpush1.bf16.msra.mxu0 %v159
    %183 = vmatprep.subr.bf16.mxu0 0
    %184 = vmatpush1.bf16.msra.mxu0 %v160
    %185 = vmatprep.subr.bf16.mxu0 0
    %186 = vmatpush1.bf16.msra.mxu0 0
    %187 = vmatprep.subr.bf16.mxu0 0
    %188 = vmatpush1.bf16.msra.mxu0 0
    %189 = vmatprep.subr.bf16.mxu0 0
    %190 = vmatpush1.bf16.msra.mxu0 0
    %191 = vmatprep.subr.bf16.mxu0 0
    %192 = vmatpush1.bf16.msra.mxu0 0
    %193 = vmatprep.subr.bf16.mxu0 0
    %194 = vmatpush1.bf16.msra.mxu0 0
    %195 = vmatprep.subr.bf16.mxu0 0
    %196 = vmatpush1.bf16.msra.mxu0 0
    %197 = vmatprep.subr.bf16.mxu0 0
    %198 = vmatpush1.bf16.msra.mxu0 0
    %199 = vmatprep.subr.bf16.mxu0 0
    %200 = vmatpush1.bf16.msra.mxu0 0
    %201 = vmatprep.mubr.bf16.mxu0 0
    %202 = vmatmul.mubr.bf16.gmra.mrb[0].mxu0 %v104
    %v203 = vpop.f32.mrb[0].mxu0
    %v204 = vadd.f32 0.0, %v203
    %v205 = vpop.f32.mrb[0].mxu0
    %v206 = vpop.f32.mrb[0].mxu0
    %v207 = vpop.f32.mrb[0].mxu0
    %208 = vdwg.mxu0
    %v209 = vld [vmem:[%s2] sm:$0x1]
    %v211 = vlaneseq
    %v212 = vshrl.u32 %v211, 7
    %v213 = vsub.s32 0, %v212
    %v214 = vrot.slane %v209, %v213
    %v216 = vadd.f32 %v103, %v214
    %v217 = vmul.f32 %v204, 2.0
    %v218 = vsub.f32 %v216, %v217
    %v219 = vmax.f32 %v218, 0.0
    %v220 = vmul.f32 %v219, -0.5
    %v221 = vmul.f32 %v220, 1.442695
    %v222 = vpow.pop %v221
    %v223 = vpack.c.bf16 %v222, %v222
    %v224 = vld [vmem:[#allocation7] sm:$0xf]
    %v225 = vld [vmem:[#allocation7 + $0x4] sm:$0xf]
    %v226 = vld [vmem:[#allocation7 + $0x8] sm:$0xf]
    %v227 = vld [vmem:[#allocation7 + $0xc] sm:$0xf]
    %v228 = vld [vmem:[#allocation7 + $0x10] sm:$0xf]
    %v229 = vld [vmem:[#allocation7 + $0x14] sm:$0xf]
    %v230 = vld [vmem:[#allocation7 + $0x18] sm:$0xf]
    %v231 = vld [vmem:[#allocation7 + $0x1c] sm:$0xf]
    %v232 = vld [vmem:[#allocation7 + $0x20] sm:$0xf]
    %v233 = vld [vmem:[#allocation7 + $0x24] sm:$0xf]
    %v234 = vld [vmem:[#allocation7 + $0x28] sm:$0xf]
    %v235 = vld [vmem:[#allocation7 + $0x2c] sm:$0xf]
    %v236 = vld [vmem:[#allocation7 + $0x30] sm:$0xf]
    %v237 = vld [vmem:[#allocation7 + $0x34] sm:$0xf]
    %v238 = vld [vmem:[#allocation7 + $0x38] sm:$0xf]
    %v239 = vld [vmem:[#allocation7 + $0x3c] sm:$0xf]
    %v240 = vld [vmem:[%s4] sm:$0x1]
    %v242 = vlaneseq
    %v243 = vshrl.u32 %v242, 7
    %v244 = vsub.s32 0, %v243
    %v245 = vrot.slane %v240, %v244
    %v263 = vunpack.c.l.b16 %v224
    %v264 = vunpack.c.l.b16 %v225
    %v265 = vunpack.c.l.b16 %v226
    %v266 = vunpack.c.l.b16 %v227
    %v267 = vunpack.c.l.b16 %v228
    %v268 = vunpack.c.l.b16 %v229
    %v269 = vunpack.c.l.b16 %v230
    %v270 = vunpack.c.l.b16 %v231
    %v271 = vunpack.c.l.b16 %v232
    %v272 = vunpack.c.l.b16 %v233
    %v273 = vunpack.c.l.b16 %v234
    %v274 = vunpack.c.l.b16 %v235
    %v275 = vunpack.c.l.b16 %v236
    %v276 = vunpack.c.l.b16 %v237
    %v277 = vunpack.c.l.b16 %v238
    %v278 = vunpack.c.l.b16 %v239
    %v279 = vpack.c.b16 %v264, %v263
    %v280 = vpack.c.b16 %v266, %v265
    %v281 = vpack.c.b16 %v268, %v267
    %v282 = vpack.c.b16 %v270, %v269
    %v283 = vpack.c.b16 %v272, %v271
    %v284 = vpack.c.b16 %v274, %v273
    %v285 = vpack.c.b16 %v276, %v275
    %v286 = vpack.c.b16 %v278, %v277
    %295 = vmatprep.subr.bf16.mxu0 0
    %296 = vmatpush1.bf16.msra.mxu0 %v279
    %297 = vmatprep.subr.bf16.mxu0 0
    %298 = vmatpush1.bf16.msra.mxu0 %v280
    %299 = vmatprep.subr.bf16.mxu0 0
    %300 = vmatpush1.bf16.msra.mxu0 %v281
    %301 = vmatprep.subr.bf16.mxu0 0
    %302 = vmatpush1.bf16.msra.mxu0 %v282
    %303 = vmatprep.subr.bf16.mxu0 0
    %304 = vmatpush1.bf16.msra.mxu0 %v283
    %305 = vmatprep.subr.bf16.mxu0 0
    %306 = vmatpush1.bf16.msra.mxu0 %v284
    %307 = vmatprep.subr.bf16.mxu0 0
    %308 = vmatpush1.bf16.msra.mxu0 %v285
    %309 = vmatprep.subr.bf16.mxu0 0
    %310 = vmatpush1.bf16.msra.mxu0 %v286
    %311 = vmatprep.subr.bf16.mxu0 0
    %312 = vmatpush1.bf16.msra.mxu0 0
    %313 = vmatprep.subr.bf16.mxu0 0
    %314 = vmatpush1.bf16.msra.mxu0 0
    %315 = vmatprep.subr.bf16.mxu0 0
    %316 = vmatpush1.bf16.msra.mxu0 0
    %317 = vmatprep.subr.bf16.mxu0 0
    %318 = vmatpush1.bf16.msra.mxu0 0
    %319 = vmatprep.subr.bf16.mxu0 0
    %320 = vmatpush1.bf16.msra.mxu0 0
    %321 = vmatprep.subr.bf16.mxu0 0
    %322 = vmatpush1.bf16.msra.mxu0 0
    %323 = vmatprep.subr.bf16.mxu0 0
    %324 = vmatpush1.bf16.msra.mxu0 0
    %325 = vmatprep.subr.bf16.mxu0 0
    %326 = vmatpush1.bf16.msra.mxu0 0
    %327 = vmatprep.mubr.bf16.mxu0 0
    %328 = vmatmul.mubr.bf16.gmra.mrb[0].mxu0 %v223
    %v329 = vpop.f32.mrb[0].mxu0
    %v330 = vadd.f32 %v245, %v329
    %v331 = vpop.f32.mrb[0].mxu0
    %v332 = vpop.f32.mrb[0].mxu0
    %v333 = vpop.f32.mrb[0].mxu0
    %334 = vdwg.mxu0
    %v335 = vmul.f32 %v330, %v330
    %336 = vadd.xlane.f32.xlu0 %v335
    %v337 = vpop.xlane.xlu0 %336
    %v338 = vpack.c.bf16 %v330, %v330
    %v339 = vld [vmem:[#allocation8] sm:$0xf]
    %v340 = vld [vmem:[#allocation8 + $0x4] sm:$0xf]
    %v341 = vld [vmem:[#allocation8 + $0x8] sm:$0xf]
    %v342 = vld [vmem:[#allocation8 + $0xc] sm:$0xf]
    %v343 = vld [vmem:[#allocation8 + $0x10] sm:$0xf]
    %v344 = vld [vmem:[#allocation8 + $0x14] sm:$0xf]
    %v345 = vld [vmem:[#allocation8 + $0x18] sm:$0xf]
    %v346 = vld [vmem:[#allocation8 + $0x1c] sm:$0xf]
    %v347 = vld [vmem:[#allocation8 + $0x20] sm:$0xf]
    %v348 = vld [vmem:[#allocation8 + $0x24] sm:$0xf]
    %v349 = vld [vmem:[#allocation8 + $0x28] sm:$0xf]
    %v350 = vld [vmem:[#allocation8 + $0x2c] sm:$0xf]
    %v351 = vld [vmem:[#allocation8 + $0x30] sm:$0xf]
    %v352 = vld [vmem:[#allocation8 + $0x34] sm:$0xf]
    %v353 = vld [vmem:[#allocation8 + $0x38] sm:$0xf]
    %v354 = vld [vmem:[#allocation8 + $0x3c] sm:$0xf]
    %v371 = vunpack.c.l.b16 %v339
    %v372 = vunpack.c.l.b16 %v340
    %v373 = vunpack.c.l.b16 %v341
    %v374 = vunpack.c.l.b16 %v342
    %v375 = vunpack.c.l.b16 %v343
    %v376 = vunpack.c.l.b16 %v344
    %v377 = vunpack.c.l.b16 %v345
    %v378 = vunpack.c.l.b16 %v346
    %v379 = vunpack.c.l.b16 %v347
    %v380 = vunpack.c.l.b16 %v348
    %v381 = vunpack.c.l.b16 %v349
    %v382 = vunpack.c.l.b16 %v350
    %v383 = vunpack.c.l.b16 %v351
    %v384 = vunpack.c.l.b16 %v352
    %v385 = vunpack.c.l.b16 %v353
    %v386 = vunpack.c.l.b16 %v354
    %v387 = vpack.c.b16 %v372, %v371
    %v388 = vpack.c.b16 %v374, %v373
    %v389 = vpack.c.b16 %v376, %v375
    %v390 = vpack.c.b16 %v378, %v377
    %v391 = vpack.c.b16 %v380, %v379
    %v392 = vpack.c.b16 %v382, %v381
    %v393 = vpack.c.b16 %v384, %v383
    %v394 = vpack.c.b16 %v386, %v385
    %403 = vmatprep.subr.bf16.mxu0 0
    %404 = vmatpush1.bf16.msra.mxu0 %v387
    %405 = vmatprep.subr.bf16.mxu0 0
    %406 = vmatpush1.bf16.msra.mxu0 %v388
    %407 = vmatprep.subr.bf16.mxu0 0
    %408 = vmatpush1.bf16.msra.mxu0 %v389
    %409 = vmatprep.subr.bf16.mxu0 0
    %410 = vmatpush1.bf16.msra.mxu0 %v390
    %411 = vmatprep.subr.bf16.mxu0 0
    %412 = vmatpush1.bf16.msra.mxu0 %v391
    %413 = vmatprep.subr.bf16.mxu0 0
    %414 = vmatpush1.bf16.msra.mxu0 %v392
    %415 = vmatprep.subr.bf16.mxu0 0
    %416 = vmatpush1.bf16.msra.mxu0 %v393
    %417 = vmatprep.subr.bf16.mxu0 0
    %418 = vmatpush1.bf16.msra.mxu0 %v394
    %419 = vmatprep.subr.bf16.mxu0 0
    %420 = vmatpush1.bf16.msra.mxu0 0
    %421 = vmatprep.subr.bf16.mxu0 0
    %422 = vmatpush1.bf16.msra.mxu0 0
    %423 = vmatprep.subr.bf16.mxu0 0
    %424 = vmatpush1.bf16.msra.mxu0 0
    %425 = vmatprep.subr.bf16.mxu0 0
    %426 = vmatpush1.bf16.msra.mxu0 0
    %427 = vmatprep.subr.bf16.mxu0 0
    %428 = vmatpush1.bf16.msra.mxu0 0
    %429 = vmatprep.subr.bf16.mxu0 0
    %430 = vmatpush1.bf16.msra.mxu0 0
    %431 = vmatprep.subr.bf16.mxu0 0
    %432 = vmatpush1.bf16.msra.mxu0 0
    %433 = vmatprep.subr.bf16.mxu0 0
    %434 = vmatpush1.bf16.msra.mxu0 0
    %435 = vmatprep.mubr.bf16.mxu0 0
    %436 = vmatmul.mubr.bf16.gmra.mrb[0].mxu0 %v338
    %v437 = vpop.f32.mrb[0].mxu0
    %v438 = vadd.f32 0.0, %v437
    %v439 = vpop.f32.mrb[0].mxu0
    %v440 = vpop.f32.mrb[0].mxu0
    %v441 = vpop.f32.mrb[0].mxu0
    %442 = vdwg.mxu0
    %v443 = vld [vmem:[%s6] sm:$0x1]
    %v445 = vlaneseq
    %v446 = vshrl.u32 %v445, 7
    %v447 = vsub.s32 0, %v446
    %v448 = vrot.slane %v443, %v447
    %v450 = vadd.f32 %v337, %v448
    %v451 = vmul.f32 %v438, 2.0
    %v452 = vsub.f32 %v450, %v451
    %v453 = vmax.f32 %v452, 0.0
    %v454 = vmul.f32 %v453, -0.5
    %v455 = vmul.f32 %v454, 1.442695
    %v456 = vpow.pop %v455
    %v457 = vpack.c.bf16 %v456, %v456
    %v458 = vld [vmem:[#allocation10] sm:$0xf]
    %v459 = vld [vmem:[#allocation10 + $0x4] sm:$0xf]
    %v460 = vld [vmem:[#allocation10 + $0x8] sm:$0xf]
    %v461 = vld [vmem:[#allocation10 + $0xc] sm:$0xf]
    %v462 = vld [vmem:[#allocation10 + $0x10] sm:$0xf]
    %v463 = vld [vmem:[#allocation10 + $0x14] sm:$0xf]
    %v464 = vld [vmem:[#allocation10 + $0x18] sm:$0xf]
    %v465 = vld [vmem:[#allocation10 + $0x1c] sm:$0xf]
    %v466 = vld [vmem:[#allocation10 + $0x20] sm:$0xf]
    %v467 = vld [vmem:[#allocation10 + $0x24] sm:$0xf]
    %v468 = vld [vmem:[#allocation10 + $0x28] sm:$0xf]
    %v469 = vld [vmem:[#allocation10 + $0x2c] sm:$0xf]
    %v470 = vld [vmem:[#allocation10 + $0x30] sm:$0xf]
    %v471 = vld [vmem:[#allocation10 + $0x34] sm:$0xf]
    %v472 = vld [vmem:[#allocation10 + $0x38] sm:$0xf]
    %v473 = vld [vmem:[#allocation10 + $0x3c] sm:$0xf]
    %v474 = vld [vmem:[%s8] sm:$0x1]
    %v476 = vlaneseq
    %v477 = vshrl.u32 %v476, 7
    %v478 = vsub.s32 0, %v477
    %v479 = vrot.slane %v474, %v478
    %v497 = vunpack.c.l.b16 %v458
    %v498 = vunpack.c.l.b16 %v459
    %v499 = vunpack.c.l.b16 %v460
    %v500 = vunpack.c.l.b16 %v461
    %v501 = vunpack.c.l.b16 %v462
    %v502 = vunpack.c.l.b16 %v463
    %v503 = vunpack.c.l.b16 %v464
    %v504 = vunpack.c.l.b16 %v465
    %v505 = vunpack.c.l.b16 %v466
    %v506 = vunpack.c.l.b16 %v467
    %v507 = vunpack.c.l.b16 %v468
    %v508 = vunpack.c.l.b16 %v469
    %v509 = vunpack.c.l.b16 %v470
    %v510 = vunpack.c.l.b16 %v471
    %v511 = vunpack.c.l.b16 %v472
    %v512 = vunpack.c.l.b16 %v473
    %v513 = vpack.c.b16 %v498, %v497
    %v514 = vpack.c.b16 %v500, %v499
    %v515 = vpack.c.b16 %v502, %v501
    %v516 = vpack.c.b16 %v504, %v503
    %v517 = vpack.c.b16 %v506, %v505
    %v518 = vpack.c.b16 %v508, %v507
    %v519 = vpack.c.b16 %v510, %v509
    %v520 = vpack.c.b16 %v512, %v511
    %529 = vmatprep.subr.bf16.mxu0 0
    %530 = vmatpush1.bf16.msra.mxu0 %v513
    %531 = vmatprep.subr.bf16.mxu0 0
    %532 = vmatpush1.bf16.msra.mxu0 %v514
    %533 = vmatprep.subr.bf16.mxu0 0
    %534 = vmatpush1.bf16.msra.mxu0 %v515
    %535 = vmatprep.subr.bf16.mxu0 0
    %536 = vmatpush1.bf16.msra.mxu0 %v516
    %537 = vmatprep.subr.bf16.mxu0 0
    %538 = vmatpush1.bf16.msra.mxu0 %v517
    %539 = vmatprep.subr.bf16.mxu0 0
    %540 = vmatpush1.bf16.msra.mxu0 %v518
    %541 = vmatprep.subr.bf16.mxu0 0
    %542 = vmatpush1.bf16.msra.mxu0 %v519
    %543 = vmatprep.subr.bf16.mxu0 0
    %544 = vmatpush1.bf16.msra.mxu0 %v520
    %545 = vmatprep.subr.bf16.mxu0 0
    %546 = vmatpush1.bf16.msra.mxu0 0
    %547 = vmatprep.subr.bf16.mxu0 0
    %548 = vmatpush1.bf16.msra.mxu0 0
    %549 = vmatprep.subr.bf16.mxu0 0
    %550 = vmatpush1.bf16.msra.mxu0 0
    %551 = vmatprep.subr.bf16.mxu0 0
    %552 = vmatpush1.bf16.msra.mxu0 0
    %553 = vmatprep.subr.bf16.mxu0 0
    %554 = vmatpush1.bf16.msra.mxu0 0
    %555 = vmatprep.subr.bf16.mxu0 0
    %556 = vmatpush1.bf16.msra.mxu0 0
    %557 = vmatprep.subr.bf16.mxu0 0
    %558 = vmatpush1.bf16.msra.mxu0 0
    %559 = vmatprep.subr.bf16.mxu0 0
    %560 = vmatpush1.bf16.msra.mxu0 0
    %561 = vmatprep.mubr.bf16.mxu0 0
    %562 = vmatmul.mubr.bf16.gmra.mrb[0].mxu0 %v457
    %v563 = vpop.f32.mrb[0].mxu0
    %v564 = vadd.f32 %v479, %v563
    %v565 = vpop.f32.mrb[0].mxu0
    %v566 = vpop.f32.mrb[0].mxu0
    %v567 = vpop.f32.mrb[0].mxu0
    %568 = vdwg.mxu0
    %569 = vst [vmem:[#allocation11] sm:$0xff] %v564
    // Predicated region
    $region58: #{tpu_custom_call.1} parent=1 // pred_check
      _
    $region59: #{tpu_custom_call.1} parent=1 // pred_check_branch
      %571 = sbr.rel (0) target = $region61
    $region60: #{tpu_custom_call.1} parent=1 // pred_region
      %s573 = ssub.s32 128, 128
      %574 = vsyncadd [#allocation4], %s573
      %s576 = sshll.u32 [#allocation11], 4
      %s577 = int_to_ptr.vmem [resolvable:$true] %s576
      %579 = dma.vmem_to_hbm [thread:$0]  %s577, 128, %s9, [#allocation4]
    $region61: #{tpu_custom_call.1} parent=1 // pred_fallthru
      _
    // Predicated region
    $region62: #{tpu_custom_call.1} parent=1 // pred_check
      _
    $region63: #{tpu_custom_call.1} parent=1 // pred_check_branch
      %581 = sbr.rel (0) target = $region65
    $region64: #{tpu_custom_call.1} parent=1 // pred_region
      %582 = dma.done [#allocation4], 128
    $region65: #{tpu_custom_call.1} parent=1 // pred_fallthru
      _
    %583 = vsyncpa [#allocation3], 1
    %584 = vsyncpa [#allocation6], 1
    %585 = vsyncpa [#allocation9], 1
    %586 = vsyncpa [#allocation4], 1

</llo_original>
